<compile_context>
chip_gen: v7x
topology: tpu7x:2x2x1
jax: 0.10.0
libtpu: 0.0.40
codegen_flags: <defaults>
</compile_context>

<pallas_src>
import jax
import jax.numpy as jnp
from jax import lax
from jax.experimental import pallas as pl
from jax.experimental.pallas import tpu as pltpu


def _make_lsr_kernel(para_lsr: float, num_classes: int):
    prob = para_lsr / float(num_classes)
    keep = 1.0 - para_lsr
    c_f = float(num_classes)

    def kernel(pre_ref, label_ref, loss_ref):
        # Single f32 upcast of the tile; everything else is a row reduction.
        x = pre_ref[...].astype(jnp.float32)                  # (TILE_B, C)
        lbl = label_ref[...]                                   # (TILE_B, 1) int32

        m = jnp.max(x, axis=-1, keepdims=True)                 # row max
        sum_x = jnp.sum(x, axis=-1, keepdims=True)             # row sum
        col = lax.broadcasted_iota(jnp.int32, x.shape, 1)
        sel_x = jnp.sum(jnp.where(col == lbl, x, 0.0),
                        axis=-1, keepdims=True)                # x[row, label[row]]

        # Stable log-sum-exp (f32 exp; see EUP TODO above for v7x/bf16).
        lse = jnp.log(jnp.sum(jnp.exp(x - m), axis=-1, keepdims=True))

        # loss_row = -sum(smooth * log_softmax(x))
        #          = -prob*(sum(x) - C*(m + lse)) - keep*(x[label] - m - lse)
        loss_ref[...] = (-prob * (sum_x - c_f * (m + lse))
                         - keep * (sel_x - m - lse))

    return kernel


def cross_entropy_loss_lsr(pre, label, para_lsr: float = 0.2,
                           size_average: bool = True, tile_b: int | None = None):
    """pre: (B, C) float (f32 or bf16) logits; label: (B,) int class indices."""
    b, c = pre.shape
    itemsize = jnp.dtype(pre.dtype).itemsize

    # Generation-aware VMEM budget (v7x has only 64 MiB / TC).
    try:
        vmem_cap = int(pltpu.get_tpu_info().vmem_capacity_bytes)
    except Exception:  # conservative fallback
        vmem_cap = 64 << 20
    budget = int(0.6 * vmem_cap)  # leave headroom for pipeline/compiler scratch

    # Per-row VMEM footprint: double-buffered native-dtype input rows plus
    # ~2x full-width f32 working rows (upcast + exp intermediate).
    per_row = 2 * c * itemsize + 2 * c * 4

    if tile_b is None:
        # Bigger logits buffers on big-VMEM chips (v5e/v6e), smaller on v7x.
        target_buf = (8 << 20) if vmem_cap >= (100 << 20) else (6 << 20)
        max_rows_target = max(8, target_buf // max(1, c * itemsize))
        max_rows_budget = max(8, (budget - (2 << 20)) // max(1, per_row))
        tile_b = min(b, max_rows_target, max_rows_budget)
    if tile_b >= b:
        tile_b = b                       # full batch in one block
    else:
        tile_b = max(8, (tile_b // 8) * 8)   # (8,128) sublane constraint

    num_tiles = pl.cdiv(b, tile_b)
    label2d = label.astype(jnp.int32).reshape(b, 1)

    vmem_needed = tile_b * per_row + (2 << 20)
    vmem_limit = int(min(budget, max(vmem_needed, 32 << 20)))

    kernel = _make_lsr_kernel(para_lsr, c)

    losses = pl.pallas_call(
        kernel,
        out_shape=jax.ShapeDtypeStruct((b, 1), jnp.float32),
        grid=(num_tiles,),
        in_specs=[
            pl.BlockSpec((tile_b, c), lambda i: (i, 0)),   # logits (native dtype)
            pl.BlockSpec((tile_b, 1), lambda i: (i, 0)),   # labels
        ],
        out_specs=pl.BlockSpec((tile_b, 1), lambda i: (i, 0)),   # per-row losses
        compiler_params=pltpu.CompilerParams(
            dimension_semantics=("parallel",),   # independent tiles -> megacore
            vmem_limit_bytes=vmem_limit,
        ),
    )(pre, label2d)

    # Tiny XLA epilogue: matches the reference's single reduction precision.
    return jnp.mean(losses) if size_average else jnp.sum(losses)


def _reference(pre, label, para_lsr=0.2, size_average=True):
    b, c = pre.shape
    prob = para_lsr / c
    onehot = jax.nn.one_hot(label, c, dtype=jnp.float32)
    smooth = prob + (1.0 - para_lsr) * onehot
    log_sm = jax.nn.log_softmax(pre.astype(jnp.float32), axis=-1)
    loss = jnp.sum(-smooth * log_sm, axis=-1)
    return jnp.mean(loss) if size_average else jnp.sum(loss)


if __name__ == "__main__":
    key = jax.random.PRNGKey(0)
    k1, k2, k3, k4, k5, k6 = jax.random.split(key, 6)

    # Case 1: small batch, mean reduction, single tile, f32.
    B, C = 8, 32
    pre = jax.random.normal(k1, (B, C), dtype=jnp.float32)
    label = jax.random.randint(k2, (B,), 0, C, dtype=jnp.int32)
    loss = cross_entropy_loss_lsr(pre, label, para_lsr=0.2, size_average=True)
    jax.block_until_ready(loss)
    ref = _reference(pre, label, para_lsr=0.2, size_average=True)
    assert jnp.allclose(loss, ref, atol=1e-5, rtol=1e-5), (loss, ref)

    # Case 2: ragged batch (B=20, tile=8), sum reduction — exercises multi-tile
    # streaming and clipped write-back of the partially out-of-bounds last block.
    B2, C2 = 20, 32
    pre2 = jax.random.normal(k3, (B2, C2), dtype=jnp.float32)
    label2 = jax.random.randint(k4, (B2,), 0, C2, dtype=jnp.int32)
    loss2 = cross_entropy_loss_lsr(pre2, label2, para_lsr=0.2,
                                   size_average=False, tile_b=8)
    jax.block_until_ready(loss2)
    ref2 = _reference(pre2, label2, para_lsr=0.2, size_average=False)
    assert jnp.allclose(loss2, ref2, atol=1e-4, rtol=1e-5), (loss2, ref2)

    # Case 3: bf16 logits streamed natively (halved HBM traffic), mean.
    B3, C3 = 16, 48
    pre3 = jax.random.normal(k5, (B3, C3), dtype=jnp.float32).astype(jnp.bfloat16)
    label3 = jax.random.randint(k6, (B3,), 0, C3, dtype=jnp.int32)
    loss3 = cross_entropy_loss_lsr(pre3, label3, para_lsr=0.2, size_average=True)
    jax.block_until_ready(loss3)
    ref3 = _reference(pre3, label3, para_lsr=0.2, size_average=True)
    assert jnp.allclose(loss3, ref3, atol=1e-3, rtol=1e-3), (loss3, ref3)

    print("KERNEL_OK")
</pallas_src>

<mosaic_0001>
module attributes {stable_mosaic.version = 11 : i64} {
  func.func @kernel(%arg0: i32, %arg1: memref<8x32xf32, #tpu.memory_space<vmem>>, %arg2: memref<8x1xi32, #tpu.memory_space<vmem>>, %arg3: memref<8x1xf32, #tpu.memory_space<vmem>>) attributes {dimension_semantics = [#tpu.dimension_semantics<parallel>], iteration_bounds = array<i64: 1>, scalar_prefetch = 0 : i64, scratch_operands = 0 : i64, tpu.core_type = #tpu.core_type<tc>, window_params = [{transform_indices = @transform_0, window_bounds = array<i64: 8, 32>}, {transform_indices = @transform_1, window_bounds = array<i64: 8, 1>}, {transform_indices = @transform_2, window_bounds = array<i64: 8, 1>}]} {
    %c0 = arith.constant 0 : index
    %c0_0 = arith.constant 0 : index
    %0 = vector.load %arg1[%c0, %c0_0] : memref<8x32xf32, #tpu.memory_space<vmem>>, vector<8x32xf32>
    %c0_1 = arith.constant 0 : index
    %c0_2 = arith.constant 0 : index
    %1 = vector.load %arg2[%c0_1, %c0_2] : memref<8x1xi32, #tpu.memory_space<vmem>>, vector<8x1xi32>
    %cst = arith.constant dense<0xFF800000> : vector<8xf32>
    %2 = vector.multi_reduction <maximumf>, %0, %cst [1] : vector<8x32xf32> to vector<8xf32>
    %3 = vector.shape_cast %2 : vector<8xf32> to vector<8x1xf32>
    %cst_3 = arith.constant dense<0.000000e+00> : vector<8xf32>
    %4 = vector.multi_reduction <add>, %0, %cst_3 [1] : vector<8x32xf32> to vector<8xf32>
    %5 = vector.shape_cast %4 : vector<8xf32> to vector<8x1xf32>
    %6 = tpu.iota {dimensions = array<i32: 1>} : vector<8x32xi32>
    %7 = vector.broadcast %1 : vector<8x1xi32> to vector<8x32xi32>
    %8 = arith.cmpi eq, %6, %7 : vector<8x32xi32>
    %cst_4 = arith.constant 0.000000e+00 : f32
    %9 = vector.broadcast %cst_4 : f32 to vector<8x32xf32>
    %10 = arith.select %8, %0, %9 : vector<8x32xi1>, vector<8x32xf32>
    %cst_5 = arith.constant dense<0.000000e+00> : vector<8xf32>
    %11 = vector.multi_reduction <add>, %10, %cst_5 [1] : vector<8x32xf32> to vector<8xf32>
    %12 = vector.shape_cast %11 : vector<8xf32> to vector<8x1xf32>
    %13 = vector.broadcast %3 : vector<8x1xf32> to vector<8x32xf32>
    %14 = arith.subf %0, %13 : vector<8x32xf32>
    %15 = math.exp %14 : vector<8x32xf32>
    %cst_6 = arith.constant dense<0.000000e+00> : vector<8xf32>
    %16 = vector.multi_reduction <add>, %15, %cst_6 [1] : vector<8x32xf32> to vector<8xf32>
    %17 = vector.shape_cast %16 : vector<8xf32> to vector<8x1xf32>
    %18 = math.log %17 : vector<8x1xf32>
    %19 = arith.addf %3, %18 : vector<8x1xf32>
    %cst_7 = arith.constant 3.200000e+01 : f32
    %20 = vector.broadcast %cst_7 : f32 to vector<8x1xf32>
    %21 = arith.mulf %20, %19 : vector<8x1xf32>
    %22 = arith.subf %5, %21 : vector<8x1xf32>
    %cst_8 = arith.constant -6.250000e-03 : f32
    %23 = vector.broadcast %cst_8 : f32 to vector<8x1xf32>
    %24 = arith.mulf %23, %22 : vector<8x1xf32>
    %25 = arith.subf %12, %3 : vector<8x1xf32>
    %26 = arith.subf %25, %18 : vector<8x1xf32>
    %cst_9 = arith.constant 8.000000e-01 : f32
    %27 = vector.broadcast %cst_9 : f32 to vector<8x1xf32>
    %28 = arith.mulf %27, %26 : vector<8x1xf32>
    %29 = arith.subf %24, %28 : vector<8x1xf32>
    %c0_10 = arith.constant 0 : index
    %c0_11 = arith.constant 0 : index
    %30 = vector.load %arg3[%c0_10, %c0_11] : memref<8x1xf32, #tpu.memory_space<vmem>>, vector<8x1xf32>
    tpu.vector_store %arg3[%c0_10, %c0_11], %29 {strides = array<i32>} : memref<8x1xf32, #tpu.memory_space<vmem>>, vector<8x1xf32>,
    return
  }
  func.func @transform_0(%arg0: i32) -> (i32, i32) {
    %c0_i32 = arith.constant 0 : i32
    %c0_i32_0 = arith.constant 0 : i32
    return %arg0, %c0_i32 : i32, i32
  }
  func.func @transform_1(%arg0: i32) -> (i32, i32) {
    %c0_i32 = arith.constant 0 : i32
    %c0_i32_0 = arith.constant 0 : i32
    return %arg0, %c0_i32 : i32, i32
  }
  func.func @transform_2(%arg0: i32) -> (i32, i32) {
    %c0_i32 = arith.constant 0 : i32
    %c0_i32_0 = arith.constant 0 : i32
    return %arg0, %c0_i32 : i32, i32
  }
}

</mosaic_0001>

<llo_original>
// kernel: tpu_custom_call.1
$region0: #{tpu_custom_call.1}
  #allocation0 [shape = 'u32[]', space=smem, size = 0x4, offset = 0x4, fixed_abs, tag = 'smem constant byte address 0x4 - core index']
  #allocation1 [shape = 'u32[144,128]{1,0:T(1,128)}', space=vmem, size = 0x12000, scoped, tag = 'internal scratch']
  %s0 = inlined_call_operand.vmem [shape: f32[8,32], index: 0, kind: input, shape index: {}]
  %s1 = inlined_call_operand.vmem [shape: s32[8,1], index: 1, kind: input, shape index: {}]
  %s2 = inlined_call_operand.vmem [shape: f32[8,1], index: 2, kind: output, shape index: {}]
  %s3 = sld [smem:[#allocation0]]
  $region18: #{tpu_custom_call.1} parent=0
    _
  %s5 = ssub.s32 1, %s3
  %s6 = scalar_select 0, %s5, %s3
  // Predicated region
  $region2: #{tpu_custom_call.1} parent=0 // pred_check
    _
  $region3: #{tpu_custom_call.1} parent=0 // pred_check_branch
    %8 = sbr.rel (0) target = $region5
  $region4: #{tpu_custom_call.1} parent=0 // pred_region
    _
  $region5: #{tpu_custom_call.1} parent=0 // pred_fallthru
    _
  // Predicated region
  $region6: #{tpu_custom_call.1} parent=0 // pred_check
    _
  $region7: #{tpu_custom_call.1} parent=0 // pred_check_branch
    %10 = sbr.rel (0) target = $region9
  $region8: #{tpu_custom_call.1} parent=0 // pred_region
    _
  $region9: #{tpu_custom_call.1} parent=0 // pred_fallthru
    _
  %v11 = vld [vmem:[%s0] sm:$0xff]
  %v12 = vld [vmem:[%s1] sm:$0xff]
  %vm13 = vcmask 261120
  %v14 = vsel %vm13, %v11, -inf
  %15 = vmax.xlane.f32.xlu0 %v14
  %v16 = vpop.xlane.xlu0 %15
  %v17 = vsel %vm13, %v11, 0.0
  %18 = vadd.xlane.f32.xlu0 %v17
  %v19 = vpop.xlane.xlu0 %18
  %v20 = vlaneseq
  %v21 = vand.u32 %v20, 127
  %22 = vset.pattern.permute.xlu0 0
  %23 = vperm.xlu0 %22, %v12
  %v24 = vpop.permute.xlu0 %23
  %vm25 = vcmp.eq.s32.totalorder %v21, %v24
  %v26 = vsel %vm25, %v11, 0.0
  %v27 = vsel %vm13, %v26, 0.0
  %28 = vadd.xlane.f32.xlu0 %v27
  %v29 = vpop.xlane.xlu0 %28
  %v30 = vsub.f32 %v11, %v16
  %v31 = vmul.f32 %v30, 1.442695
  %v32 = vpow.pop %v31
  %v33 = vsel %vm13, %v32, 0.0
  %34 = vadd.xlane.f32.xlu0 %v33
  %v35 = vpop.xlane.xlu0 %34
  %v36 = vlog2.pop %v35
  %v37 = vmul.f32 %v36, 0.6931472
  %v38 = vadd.f32 %v16, %v37
  %v39 = vmul.f32 %v38, 32.0
  %v40 = vsub.f32 %v19, %v39
  %v41 = vmul.f32 %v40, -0.00625
  %v42 = vsub.f32 %v29, %v16
  %v43 = vsub.f32 %v42, %v37
  %v44 = vmul.f32 %v43, 0.8
  %v45 = vsub.f32 %v41, %v44
  %vm46 = vcmask 7168
  %47 = vst.msk [vmem:[%s2] sm:$0xff] %vm46, %v45
  // Predicated region
  $region10: #{tpu_custom_call.1} parent=0 // pred_check
    _
  $region11: #{tpu_custom_call.1} parent=0 // pred_check_branch
    %49 = sbr.rel (0) target = $region13
  $region12: #{tpu_custom_call.1} parent=0 // pred_region
    _
  $region13: #{tpu_custom_call.1} parent=0 // pred_fallthru
    _
  // Predicated region
  $region14: #{tpu_custom_call.1} parent=0 // pred_check
    _
  $region15: #{tpu_custom_call.1} parent=0 // pred_check_branch
    %51 = sbr.rel (0) target = $region17
  $region16: #{tpu_custom_call.1} parent=0 // pred_region
    _
  $region17: #{tpu_custom_call.1} parent=0 // pred_fallthru
    _

</llo_original>
